<compile_context>
chip_gen: v5e
topology: v5e:2x2
jax: 0.10.0
libtpu: 0.0.40
codegen_flags: <defaults>
</compile_context>

<pallas_src>
import functools

import jax
import jax.numpy as jnp
from jax.experimental import pallas as pl
from jax.experimental.pallas import tpu as pltpu


def _cross_attn_kernel(q_ref, x_ref, wq_ref, wk_ref, wv_ref, wp_ref, o_ref,
                       qs_ref, m_ref, l_ref, acc_ref, oacc_ref,
                       *, scale: float, qk_norm: bool):
    # Grid: (b, i, h, kv)  — kv innermost, then head.
    h = pl.program_id(2)
    kv = pl.program_id(3)
    n_heads = pl.num_programs(2)
    n_kv = pl.num_programs(3)

    # --- zero the cross-head output accumulator at the start of a q tile ---
    @pl.when(jnp.logical_and(h == 0, kv == 0))
    def _zero_out_acc():
        oacc_ref[...] = jnp.zeros(oacc_ref.shape, dtype=oacc_ref.dtype)

    # --- per-head prologue (first kv step): project + normalize + scale q ---
    @pl.when(kv == 0)
    def _start_head():
        q_bf = q_ref[0].astype(jnp.bfloat16)                         # (TQ, C)
        qh = jnp.dot(q_bf, wq_ref[0],                                # (TQ, hd)
                     preferred_element_type=jnp.float32)
        if qk_norm:
            # matches torch.nn.functional.normalize(eps=1e-12):
            # x / max(||x||, eps) == x * rsqrt(max(sum(x^2), eps^2))
            qh = qh * jax.lax.rsqrt(
                jnp.maximum(jnp.sum(qh * qh, axis=-1, keepdims=True), 1e-24))
        qs_ref[...] = (qh * scale).astype(jnp.bfloat16)
        m_ref[...] = jnp.full(m_ref.shape, -jnp.inf, dtype=m_ref.dtype)
        l_ref[...] = jnp.zeros(l_ref.shape, dtype=l_ref.dtype)
        acc_ref[...] = jnp.zeros(acc_ref.shape, dtype=acc_ref.dtype)

    # --- per kv-tile: project k/v for this head, online-softmax update ---
    x_bf = x_ref[0].astype(jnp.bfloat16)                             # (TK, C)
    kh = jnp.dot(x_bf, wk_ref[0], preferred_element_type=jnp.float32)  # (TK, hd)
    vh = jnp.dot(x_bf, wv_ref[0], preferred_element_type=jnp.float32)  # (TK, hd)
    if qk_norm:
        kh = kh * jax.lax.rsqrt(
            jnp.maximum(jnp.sum(kh * kh, axis=-1, keepdims=True), 1e-24))

    # scores = (q * scale) @ k^T without an explicit transpose.
    s = jax.lax.dot_general(qs_ref[...], kh.astype(jnp.bfloat16),
                            (((1,), (1,)), ((), ())),
                            preferred_element_type=jnp.float32)      # (TQ, TK)

    m_prev = m_ref[...]
    m_new = jnp.maximum(m_prev, jnp.max(s, axis=-1, keepdims=True))
    alpha = jnp.exp(m_prev - m_new)
    p = jnp.exp(s - m_new)                                           # f32
    l_ref[...] = alpha * l_ref[...] + jnp.sum(p, axis=-1, keepdims=True)
    acc_ref[...] = alpha * acc_ref[...] + jnp.dot(
        p.astype(jnp.bfloat16), vh.astype(jnp.bfloat16),
        preferred_element_type=jnp.float32)                          # (TQ, hd)
    m_ref[...] = m_new

    # --- per-head epilogue: fold this head into the output projection ---
    @pl.when(kv == n_kv - 1)
    def _end_head():
        ctx = acc_ref[...] * pl.reciprocal(l_ref[...], approx=True)  # (TQ, hd)
        oacc_ref[...] += jnp.dot(ctx.astype(jnp.bfloat16), wp_ref[0],
                                 preferred_element_type=jnp.float32)  # (TQ, C)

    # --- last head, last kv tile: single lane-dense store of the output ---
    @pl.when(jnp.logical_and(kv == n_kv - 1, h == n_heads - 1))
    def _write_out():
        o_ref[0] = oacc_ref[...].astype(o_ref.dtype)


def _pick_tile(n: int, cap: int) -> int:
    """Largest tile <= cap that divides n and is a multiple of 8 (or n itself)."""
    if n <= cap:
        return n
    for t in range(cap, 7, -1):
        if n % t == 0 and t % 8 == 0:
            return t
    return n  # fallback: single full-extent tile


def cross_attention(q, x, wq, wkv, wproj, *, num_heads: int, qk_norm: bool = True,
                    q_tile: int = 256, kv_tile: int = 512):
    """q: (B, N1, C), x: (B, N2, C); wq: (C, C), wkv: (C, 2C), wproj: (C, C).

    Weights are stored as (in, out) so that y = x @ w (transpose of the
    PyTorch nn.Linear weight). Returns (B, N1, C) in q.dtype.
    """
    B, N1, C = q.shape
    Bx, N2, Cx = x.shape
    assert Bx == B and Cx == C
    assert C % num_heads == 0
    H = num_heads
    hd = C // H
    scale = float(hd) ** (-0.5)

    # Split the weights per head OUTSIDE the kernel (no in-kernel lane slicing
    # of kvp / head columns), and pre-cast to bf16 for the MXU.
    wq_h = jnp.transpose(wq.reshape(C, H, hd), (1, 0, 2)).astype(jnp.bfloat16)          # (H, C, hd)
    wk_h = jnp.transpose(wkv[:, :C].reshape(C, H, hd), (1, 0, 2)).astype(jnp.bfloat16)  # (H, C, hd)
    wv_h = jnp.transpose(wkv[:, C:].reshape(C, H, hd), (1, 0, 2)).astype(jnp.bfloat16)  # (H, C, hd)
    wp_h = wproj.reshape(H, hd, C).astype(jnp.bfloat16)                                 # (H, hd, C)

    TQ = _pick_tile(N1, q_tile)
    TK = _pick_tile(N2, kv_tile)
    grid = (B, N1 // TQ, H, N2 // TK)

    kernel = functools.partial(_cross_attn_kernel, scale=scale, qk_norm=qk_norm)

    return pl.pallas_call(
        kernel,
        out_shape=jax.ShapeDtypeStruct((B, N1, C), q.dtype),
        grid_spec=pltpu.PrefetchScalarGridSpec(
            num_scalar_prefetch=0,
            grid=grid,
            in_specs=[
                pl.BlockSpec((1, TQ, C), lambda b, i, h, j: (b, i, 0)),   # q tile
                pl.BlockSpec((1, TK, C), lambda b, i, h, j: (b, j, 0)),   # kv tile
                pl.BlockSpec((1, C, hd), lambda b, i, h, j: (h, 0, 0)),   # wq[h]
                pl.BlockSpec((1, C, hd), lambda b, i, h, j: (h, 0, 0)),   # wk[h]
                pl.BlockSpec((1, C, hd), lambda b, i, h, j: (h, 0, 0)),   # wv[h]
                pl.BlockSpec((1, hd, C), lambda b, i, h, j: (h, 0, 0)),   # wproj[h]
            ],
            out_specs=pl.BlockSpec((1, TQ, C), lambda b, i, h, j: (b, i, 0)),
            scratch_shapes=[
                pltpu.VMEM((TQ, hd), jnp.bfloat16),   # normalized+scaled q head
                pltpu.VMEM((TQ, 1), jnp.float32),     # running row max
                pltpu.VMEM((TQ, 1), jnp.float32),     # running softmax denom
                pltpu.VMEM((TQ, hd), jnp.float32),    # running context accumulator
                pltpu.VMEM((TQ, C), jnp.float32),     # output (over-heads) accumulator
            ],
        ),
        compiler_params=pltpu.CompilerParams(
            dimension_semantics=("parallel", "parallel", "arbitrary", "arbitrary"),
            # Explicit budget (<= physical on v5e/v6e/v7x); tiles above are sized
            # so double-buffered inputs + scratch stay well under this.
            vmem_limit_bytes=64 * 1024 * 1024,
        ),
    )(q, x, wq_h, wk_h, wv_h, wp_h)


def _reference(q, x, wq, wkv, wproj, *, num_heads: int, qk_norm: bool = True):
    """Pure-JAX f32 reference matching the PyTorch forward."""
    B, N1, C = q.shape
    _, N2, _ = x.shape
    head_dim = C // num_heads
    scale = head_dim ** (-0.5)

    qp = q @ wq                                   # (B, N1, C)
    kvp = x @ wkv                                 # (B, N2, 2C)
    kp, vp = kvp[..., :C], kvp[..., C:]

    def to_heads(t, n):
        return t.reshape(B, n, num_heads, head_dim).transpose(0, 2, 1, 3)

    qh = to_heads(qp, N1)
    kh = to_heads(kp, N2)
    vh = to_heads(vp, N2)

    if qk_norm:
        qh = qh / jnp.maximum(jnp.linalg.norm(qh, axis=-1, keepdims=True), 1e-12)
        kh = kh / jnp.maximum(jnp.linalg.norm(kh, axis=-1, keepdims=True), 1e-12)

    scores = (qh * scale) @ kh.transpose(0, 1, 3, 2)
    attn = jax.nn.softmax(scores, axis=-1)
    ctx = attn @ vh                               # (B, H, N1, hd)
    ctx = ctx.transpose(0, 2, 1, 3).reshape(B, N1, C)
    return ctx @ wproj


if __name__ == "__main__":
    # Small shapes consistent with the module.
    B, N1, N2 = 2, 8, 16
    num_heads = 4
    C = 32  # dim; head_dim = 8

    key = jax.random.PRNGKey(0)
    k_q, k_x, k_wq, k_wkv, k_wp = jax.random.split(key, 5)

    q_in = jax.random.normal(k_q, (B, N1, C), dtype=jnp.float32)
    x_in = jax.random.normal(k_x, (B, N2, C), dtype=jnp.float32)

    # Deterministic parameter init (no biases: qkv_bias=False, proj bias=False).
    # Stored as (in, out).
    s = 1.0 / (C ** 0.5)
    wq = jax.random.uniform(k_wq, (C, C), jnp.float32, -s, s)
    wkv = jax.random.uniform(k_wkv, (C, 2 * C), jnp.float32, -s, s)
    wproj = jax.random.uniform(k_wp, (C, C), jnp.float32, -s, s)

    out = cross_attention(q_in, x_in, wq, wkv, wproj,
                          num_heads=num_heads, qk_norm=True)
    out = jax.block_until_ready(out)

    ref = _reference(q_in, x_in, wq, wkv, wproj,
                     num_heads=num_heads, qk_norm=True)
    assert out.shape == (B, N1, C)
    # bf16 MXU operands + approx EUP reciprocal -> compare against the f32
    # reference with a correspondingly relaxed tolerance.
    assert jnp.allclose(out, ref, atol=2e-2, rtol=2e-2), "mismatch vs reference"

    print("KERNEL_OK")
</pallas_src>

<mosaic_0001>
module attributes {stable_mosaic.version = 11 : i64} {
  func.func @_cross_attn_kernel(%arg0: i32, %arg1: i32, %arg2: i32, %arg3: i32, %arg4: memref<1x8x32xf32, #tpu.memory_space<vmem>>, %arg5: memref<1x16x32xf32, #tpu.memory_space<vmem>>, %arg6: memref<1x32x8xbf16, #tpu.memory_space<vmem>>, %arg7: memref<1x32x8xbf16, #tpu.memory_space<vmem>>, %arg8: memref<1x32x8xbf16, #tpu.memory_space<vmem>>, %arg9: memref<1x8x32xbf16, #tpu.memory_space<vmem>>, %arg10: memref<1x8x32xf32, #tpu.memory_space<vmem>>, %arg11: memref<8x8xbf16, #tpu.memory_space<vmem>>, %arg12: memref<8x1xf32, #tpu.memory_space<vmem>>, %arg13: memref<8x1xf32, #tpu.memory_space<vmem>>, %arg14: memref<8x8xf32, #tpu.memory_space<vmem>>, %arg15: memref<8x32xf32, #tpu.memory_space<vmem>>) attributes {dimension_semantics = [#tpu.dimension_semantics<parallel>, #tpu.dimension_semantics<parallel>, #tpu.dimension_semantics<arbitrary>, #tpu.dimension_semantics<arbitrary>], iteration_bounds = array<i64: 2, 1, 4, 1>, scalar_prefetch = 0 : i64, scratch_operands = 5 : i64, tpu.core_type = #tpu.core_type<tc>, window_params = [{transform_indices = @transform_0, window_bounds = array<i64: 1, 8, 32>}, {transform_indices = @transform_1, window_bounds = array<i64: 1, 16, 32>}, {transform_indices = @transform_2, window_bounds = array<i64: 1, 32, 8>}, {transform_indices = @transform_3, window_bounds = array<i64: 1, 32, 8>}, {transform_indices = @transform_4, window_bounds = array<i64: 1, 32, 8>}, {transform_indices = @transform_5, window_bounds = array<i64: 1, 8, 32>}, {transform_indices = @transform_6, window_bounds = array<i64: 1, 8, 32>}]} {
    %c0_i32 = arith.constant 0 : i32
    %0 = arith.cmpi eq, %arg2, %c0_i32 : i32
    %c0_i32_0 = arith.constant 0 : i32
    %1 = arith.cmpi eq, %arg3, %c0_i32_0 : i32
    %2 = arith.andi %0, %1 : i1
    %3 = arith.extui %2 : i1 to i32
    %c0_i32_1 = arith.constant 0 : i32
    %4 = arith.cmpi ne, %3, %c0_i32_1 : i32
    scf.if %4 {
      %cst_37 = arith.constant 0.000000e+00 : f32
      %60 = vector.broadcast %cst_37 : f32 to vector<8x32xf32>
      %c0_38 = arith.constant 0 : index
      %c0_39 = arith.constant 0 : index
      %61 = vector.load %arg15[%c0_38, %c0_39] : memref<8x32xf32, #tpu.memory_space<vmem>>, vector<8x32xf32>
      tpu.vector_store %arg15[%c0_38, %c0_39], %60 {strides = array<i32>} : memref<8x32xf32, #tpu.memory_space<vmem>>, vector<8x32xf32>,
    } else {
    }
    %c0_i32_2 = arith.constant 0 : i32
    %5 = arith.cmpi eq, %arg3, %c0_i32_2 : i32
    %6 = arith.extui %5 : i1 to i32
    %c0_i32_3 = arith.constant 0 : i32
    %7 = arith.cmpi ne, %6, %c0_i32_3 : i32
    scf.if %7 {
      %c0_37 = arith.constant 0 : index
      %c0_38 = arith.constant 0 : index
      %c0_39 = arith.constant 0 : index
      %60 = vector.load %arg4[%c0_37, %c0_38, %c0_39] : memref<1x8x32xf32, #tpu.memory_space<vmem>>, vector<1x8x32xf32>
      %61 = vector.shape_cast %60 : vector<1x8x32xf32> to vector<8x32xf32>
      %62 = arith.truncf %61 : vector<8x32xf32> to vector<8x32xbf16>
      %c0_40 = arith.constant 0 : index
      %c0_41 = arith.constant 0 : index
      %c0_42 = arith.constant 0 : index
      %63 = vector.load %arg6[%c0_40, %c0_41, %c0_42] : memref<1x32x8xbf16, #tpu.memory_space<vmem>>, vector<1x32x8xbf16>
      %64 = vector.shape_cast %63 : vector<1x32x8xbf16> to vector<32x8xbf16>
      %cst_43 = arith.constant dense<0.000000e+00> : vector<8x8xf32>
      %65 = tpu.matmul %62, %64, %cst_43 {dimension_numbers = #tpu.dot_dimension_numbers<[1], [0], [0], [1], [0, 0, 1, 1], [], []>} : vector<8x32xbf16>, vector<32x8xbf16>, vector<8x8xf32> -> vector<8x8xf32>
      %66 = arith.mulf %65, %65 : vector<8x8xf32>
      %cst_44 = arith.constant dense<0.000000e+00> : vector<8xf32>
      %67 = vector.multi_reduction <add>, %66, %cst_44 [1] : vector<8x8xf32> to vector<8xf32>
      %68 = vector.shape_cast %67 : vector<8xf32> to vector<8x1xf32>
      %cst_45 = arith.constant 1.000000e-24 : f32
      %69 = vector.broadcast %cst_45 : f32 to vector<8x1xf32>
      %70 = arith.maximumf %68, %69 : vector<8x1xf32>
      %71 = math.rsqrt %70 : vector<8x1xf32>
      %72 = vector.broadcast %71 : vector<8x1xf32> to vector<8x8xf32>
      %73 = arith.mulf %65, %72 : vector<8x8xf32>
      %cst_46 = arith.constant 0.353553385 : f32
      %74 = vector.broadcast %cst_46 : f32 to vector<8x8xf32>
      %75 = arith.mulf %73, %74 : vector<8x8xf32>
      %76 = arith.truncf %75 : vector<8x8xf32> to vector<8x8xbf16>
      %c0_47 = arith.constant 0 : index
      %c0_48 = arith.constant 0 : index
      %77 = vector.load %arg11[%c0_47, %c0_48] : memref<8x8xbf16, #tpu.memory_space<vmem>>, vector<8x8xbf16>
      tpu.vector_store %arg11[%c0_47, %c0_48], %76 {strides = array<i32>} : memref<8x8xbf16, #tpu.memory_space<vmem>>, vector<8x8xbf16>,
      %cst_49 = arith.constant 0xFF800000 : f32
      %78 = vector.broadcast %cst_49 : f32 to vector<8x1xf32>
      %c0_50 = arith.constant 0 : index
      %c0_51 = arith.constant 0 : index
      %79 = vector.load %arg12[%c0_50, %c0_51] : memref<8x1xf32, #tpu.memory_space<vmem>>, vector<8x1xf32>
      tpu.vector_store %arg12[%c0_50, %c0_51], %78 {strides = array<i32>} : memref<8x1xf32, #tpu.memory_space<vmem>>, vector<8x1xf32>,
      %cst_52 = arith.constant 0.000000e+00 : f32
      %80 = vector.broadcast %cst_52 : f32 to vector<8x1xf32>
      %c0_53 = arith.constant 0 : index
      %c0_54 = arith.constant 0 : index
      %81 = vector.load %arg13[%c0_53, %c0_54] : memref<8x1xf32, #tpu.memory_space<vmem>>, vector<8x1xf32>
      tpu.vector_store %arg13[%c0_53, %c0_54], %80 {strides = array<i32>} : memref<8x1xf32, #tpu.memory_space<vmem>>, vector<8x1xf32>,
      %cst_55 = arith.constant 0.000000e+00 : f32
      %82 = vector.broadcast %cst_55 : f32 to vector<8x8xf32>
      %c0_56 = arith.constant 0 : index
      %c0_57 = arith.constant 0 : index
      %83 = vector.load %arg14[%c0_56, %c0_57] : memref<8x8xf32, #tpu.memory_space<vmem>>, vector<8x8xf32>
      tpu.vector_store %arg14[%c0_56, %c0_57], %82 {strides = array<i32>} : memref<8x8xf32, #tpu.memory_space<vmem>>, vector<8x8xf32>,
    } else {
    }
    %c0 = arith.constant 0 : index
    %c0_4 = arith.constant 0 : index
    %c0_5 = arith.constant 0 : index
    %8 = vector.load %arg5[%c0, %c0_4, %c0_5] : memref<1x16x32xf32, #tpu.memory_space<vmem>>, vector<1x16x32xf32>
    %9 = vector.shape_cast %8 : vector<1x16x32xf32> to vector<16x32xf32>
    %10 = arith.truncf %9 : vector<16x32xf32> to vector<16x32xbf16>
    %c0_6 = arith.constant 0 : index
    %c0_7 = arith.constant 0 : index
    %c0_8 = arith.constant 0 : index
    %11 = vector.load %arg7[%c0_6, %c0_7, %c0_8] : memref<1x32x8xbf16, #tpu.memory_space<vmem>>, vector<1x32x8xbf16>
    %12 = vector.shape_cast %11 : vector<1x32x8xbf16> to vector<32x8xbf16>
    %cst = arith.constant dense<0.000000e+00> : vector<16x8xf32>
    %13 = tpu.matmul %10, %12, %cst {dimension_numbers = #tpu.dot_dimension_numbers<[1], [0], [0], [1], [0, 0, 1, 1], [], []>} : vector<16x32xbf16>, vector<32x8xbf16>, vector<16x8xf32> -> vector<16x8xf32>
    %c0_9 = arith.constant 0 : index
    %c0_10 = arith.constant 0 : index
    %c0_11 = arith.constant 0 : index
    %14 = vector.load %arg8[%c0_9, %c0_10, %c0_11] : memref<1x32x8xbf16, #tpu.memory_space<vmem>>, vector<1x32x8xbf16>
    %15 = vector.shape_cast %14 : vector<1x32x8xbf16> to vector<32x8xbf16>
    %cst_12 = arith.constant dense<0.000000e+00> : vector<16x8xf32>
    %16 = tpu.matmul %10, %15, %cst_12 {dimension_numbers = #tpu.dot_dimension_numbers<[1], [0], [0], [1], [0, 0, 1, 1], [], []>} : vector<16x32xbf16>, vector<32x8xbf16>, vector<16x8xf32> -> vector<16x8xf32>
    %17 = arith.mulf %13, %13 : vector<16x8xf32>
    %cst_13 = arith.constant dense<0.000000e+00> : vector<16xf32>
    %18 = vector.multi_reduction <add>, %17, %cst_13 [1] : vector<16x8xf32> to vector<16xf32>
    %19 = vector.shape_cast %18 : vector<16xf32> to vector<16x1xf32>
    %cst_14 = arith.constant 1.000000e-24 : f32
    %20 = vector.broadcast %cst_14 : f32 to vector<16x1xf32>
    %21 = arith.maximumf %19, %20 : vector<16x1xf32>
    %22 = math.rsqrt %21 : vector<16x1xf32>
    %23 = vector.broadcast %22 : vector<16x1xf32> to vector<16x8xf32>
    %24 = arith.mulf %13, %23 : vector<16x8xf32>
    %c0_15 = arith.constant 0 : index
    %c0_16 = arith.constant 0 : index
    %25 = vector.load %arg11[%c0_15, %c0_16] : memref<8x8xbf16, #tpu.memory_space<vmem>>, vector<8x8xbf16>
    %26 = arith.truncf %24 : vector<16x8xf32> to vector<16x8xbf16>
    %cst_17 = arith.constant dense<0.000000e+00> : vector<8x16xf32>
    %27 = tpu.matmul %25, %26, %cst_17 {dimension_numbers = #tpu.dot_dimension_numbers<[1], [1], [0], [0], [0, 0, 1, 0], [], []>} : vector<8x8xbf16>, vector<16x8xbf16>, vector<8x16xf32> -> vector<8x16xf32>
    %c0_18 = arith.constant 0 : index
    %c0_19 = arith.constant 0 : index
    %28 = vector.load %arg12[%c0_18, %c0_19] : memref<8x1xf32, #tpu.memory_space<vmem>>, vector<8x1xf32>
    %cst_20 = arith.constant dense<0xFF800000> : vector<8xf32>
    %29 = vector.multi_reduction <maximumf>, %27, %cst_20 [1] : vector<8x16xf32> to vector<8xf32>
    %30 = vector.shape_cast %29 : vector<8xf32> to vector<8x1xf32>
    %31 = arith.maximumf %28, %30 : vector<8x1xf32>
    %32 = arith.subf %28, %31 : vector<8x1xf32>
    %33 = math.exp %32 : vector<8x1xf32>
    %34 = vector.broadcast %31 : vector<8x1xf32> to vector<8x16xf32>
    %35 = arith.subf %27, %34 : vector<8x16xf32>
    %36 = math.exp %35 : vector<8x16xf32>
    %c0_21 = arith.constant 0 : index
    %c0_22 = arith.constant 0 : index
    %37 = vector.load %arg13[%c0_21, %c0_22] : memref<8x1xf32, #tpu.memory_space<vmem>>, vector<8x1xf32>
    %38 = arith.mulf %33, %37 : vector<8x1xf32>
    %cst_23 = arith.constant dense<0.000000e+00> : vector<8xf32>
    %39 = vector.multi_reduction <add>, %36, %cst_23 [1] : vector<8x16xf32> to vector<8xf32>
    %40 = vector.shape_cast %39 : vector<8xf32> to vector<8x1xf32>
    %41 = arith.addf %38, %40 : vector<8x1xf32>
    %c0_24 = arith.constant 0 : index
    %c0_25 = arith.constant 0 : index
    %42 = vector.load %arg13[%c0_24, %c0_25] : memref<8x1xf32, #tpu.memory_space<vmem>>, vector<8x1xf32>
    tpu.vector_store %arg13[%c0_24, %c0_25], %41 {strides = array<i32>} : memref<8x1xf32, #tpu.memory_space<vmem>>, vector<8x1xf32>,
    %c0_26 = arith.constant 0 : index
    %c0_27 = arith.constant 0 : index
    %43 = vector.load %arg14[%c0_26, %c0_27] : memref<8x8xf32, #tpu.memory_space<vmem>>, vector<8x8xf32>
    %44 = vector.broadcast %33 : vector<8x1xf32> to vector<8x8xf32>
    %45 = arith.mulf %44, %43 : vector<8x8xf32>
    %46 = arith.truncf %36 : vector<8x16xf32> to vector<8x16xbf16>
    %47 = arith.truncf %16 : vector<16x8xf32> to vector<16x8xbf16>
    %cst_28 = arith.constant dense<0.000000e+00> : vector<8x8xf32>
    %48 = tpu.matmul %46, %47, %cst_28 {dimension_numbers = #tpu.dot_dimension_numbers<[1], [0], [0], [1], [0, 0, 1, 1], [], []>} : vector<8x16xbf16>, vector<16x8xbf16>, vector<8x8xf32> -> vector<8x8xf32>
    %49 = arith.addf %45, %48 : vector<8x8xf32>
    %c0_29 = arith.constant 0 : index
    %c0_30 = arith.constant 0 : index
    %50 = vector.load %arg14[%c0_29, %c0_30] : memref<8x8xf32, #tpu.memory_space<vmem>>, vector<8x8xf32>
    tpu.vector_store %arg14[%c0_29, %c0_30], %49 {strides = array<i32>} : memref<8x8xf32, #tpu.memory_space<vmem>>, vector<8x8xf32>,
    %c0_31 = arith.constant 0 : index
    %c0_32 = arith.constant 0 : index
    %51 = vector.load %arg12[%c0_31, %c0_32] : memref<8x1xf32, #tpu.memory_space<vmem>>, vector<8x1xf32>
    tpu.vector_store %arg12[%c0_31, %c0_32], %31 {strides = array<i32>} : memref<8x1xf32, #tpu.memory_space<vmem>>, vector<8x1xf32>,
    %c0_i32_33 = arith.constant 0 : i32
    %52 = arith.cmpi eq, %arg3, %c0_i32_33 : i32
    %53 = arith.extui %52 : i1 to i32
    %c0_i32_34 = arith.constant 0 : i32
    %54 = arith.cmpi ne, %53, %c0_i32_34 : i32
    scf.if %54 {
      %c0_37 = arith.constant 0 : index
      %c0_38 = arith.constant 0 : index
      %60 = vector.load %arg14[%c0_37, %c0_38] : memref<8x8xf32, #tpu.memory_space<vmem>>, vector<8x8xf32>
      %c0_39 = arith.constant 0 : index
      %c0_40 = arith.constant 0 : index
      %61 = vector.load %arg13[%c0_39, %c0_40] : memref<8x1xf32, #tpu.memory_space<vmem>>, vector<8x1xf32>
      %62 = tpu.reciprocal %61 {approx = true} : vector<8x1xf32> -> vector<8x1xf32>
      %63 = vector.broadcast %62 : vector<8x1xf32> to vector<8x8xf32>
      %64 = arith.mulf %60, %63 : vector<8x8xf32>
      %c0_41 = arith.constant 0 : index
      %c0_42 = arith.constant 0 : index
      %65 = vector.load %arg15[%c0_41, %c0_42] : memref<8x32xf32, #tpu.memory_space<vmem>>, vector<8x32xf32>
      %66 = arith.truncf %64 : vector<8x8xf32> to vector<8x8xbf16>
      %c0_43 = arith.constant 0 : index
      %c0_44 = arith.constant 0 : index
      %c0_45 = arith.constant 0 : index
      %67 = vector.load %arg9[%c0_43, %c0_44, %c0_45] : memref<1x8x32xbf16, #tpu.memory_space<vmem>>, vector<1x8x32xbf16>
      %68 = vector.shape_cast %67 : vector<1x8x32xbf16> to vector<8x32xbf16>
      %cst_46 = arith.constant dense<0.000000e+00> : vector<8x32xf32>
      %69 = tpu.matmul %66, %68, %cst_46 {dimension_numbers = #tpu.dot_dimension_numbers<[1], [0], [0], [1], [0, 0, 1, 1], [], []>} : vector<8x8xbf16>, vector<8x32xbf16>, vector<8x32xf32> -> vector<8x32xf32>
      %70 = arith.addf %65, %69 : vector<8x32xf32>
      %c0_47 = arith.constant 0 : index
      %c0_48 = arith.constant 0 : index
      %71 = vector.load %arg15[%c0_47, %c0_48] : memref<8x32xf32, #tpu.memory_space<vmem>>, vector<8x32xf32>
      tpu.vector_store %arg15[%c0_47, %c0_48], %70 {strides = array<i32>} : memref<8x32xf32, #tpu.memory_space<vmem>>, vector<8x32xf32>,
    } else {
    }
    %c0_i32_35 = arith.constant 0 : i32
    %55 = arith.cmpi eq, %arg3, %c0_i32_35 : i32
    %c3_i32 = arith.constant 3 : i32
    %56 = arith.cmpi eq, %arg2, %c3_i32 : i32
    %57 = arith.andi %55, %56 : i1
    %58 = arith.extui %57 : i1 to i32
    %c0_i32_36 = arith.constant 0 : i32
    %59 = arith.cmpi ne, %58, %c0_i32_36 : i32
    scf.if %59 {
      %c0_37 = arith.constant 0 : index
      %c0_38 = arith.constant 0 : index
      %60 = vector.load %arg15[%c0_37, %c0_38] : memref<8x32xf32, #tpu.memory_space<vmem>>, vector<8x32xf32>
      %c0_39 = arith.constant 0 : index
      %c0_40 = arith.constant 0 : index
      %c0_41 = arith.constant 0 : index
      %61 = vector.load %arg10[%c0_39, %c0_40, %c0_41] : memref<1x8x32xf32, #tpu.memory_space<vmem>>, vector<1x8x32xf32>
      %62 = vector.shape_cast %61 : vector<1x8x32xf32> to vector<8x32xf32>
      %63 = vector.shape_cast %60 : vector<8x32xf32> to vector<1x8x32xf32>
      tpu.vector_store %arg10[%c0_39, %c0_40, %c0_41], %63 {strides = array<i32>} : memref<1x8x32xf32, #tpu.memory_space<vmem>>, vector<1x8x32xf32>,
    } else {
    }
    return
  }
  func.func @transform_0(%arg0: i32, %arg1: i32, %arg2: i32, %arg3: i32) -> (i32, i32, i32) {
    %c0_i32 = arith.constant 0 : i32
    %c0_i32_0 = arith.constant 0 : i32
    return %arg0, %arg1, %c0_i32 : i32, i32, i32
  }
  func.func @transform_1(%arg0: i32, %arg1: i32, %arg2: i32, %arg3: i32) -> (i32, i32, i32) {
    %c0_i32 = arith.constant 0 : i32
    %c0_i32_0 = arith.constant 0 : i32
    return %arg0, %arg3, %c0_i32 : i32, i32, i32
  }
  func.func @transform_2(%arg0: i32, %arg1: i32, %arg2: i32, %arg3: i32) -> (i32, i32, i32) {
    %c0_i32 = arith.constant 0 : i32
    %c0_i32_0 = arith.constant 0 : i32
    %c0_i32_1 = arith.constant 0 : i32
    return %arg2, %c0_i32, %c0_i32_0 : i32, i32, i32
  }
  func.func @transform_3(%arg0: i32, %arg1: i32, %arg2: i32, %arg3: i32) -> (i32, i32, i32) {
    %c0_i32 = arith.constant 0 : i32
    %c0_i32_0 = arith.constant 0 : i32
    %c0_i32_1 = arith.constant 0 : i32
    return %arg2, %c0_i32, %c0_i32_0 : i32, i32, i32
  }
  func.func @transform_4(%arg0: i32, %arg1: i32, %arg2: i32, %arg3: i32) -> (i32, i32, i32) {
    %c0_i32 = arith.constant 0 : i32
    %c0_i32_0 = arith.constant 0 : i32
    %c0_i32_1 = arith.constant 0 : i32
    return %arg2, %c0_i32, %c0_i32_0 : i32, i32, i32
  }
  func.func @transform_5(%arg0: i32, %arg1: i32, %arg2: i32, %arg3: i32) -> (i32, i32, i32) {
    %c0_i32 = arith.constant 0 : i32
    %c0_i32_0 = arith.constant 0 : i32
    %c0_i32_1 = arith.constant 0 : i32
    return %arg2, %c0_i32, %c0_i32_0 : i32, i32, i32
  }
  func.func @transform_6(%arg0: i32, %arg1: i32, %arg2: i32, %arg3: i32) -> (i32, i32, i32) {
    %c0_i32 = arith.constant 0 : i32
    %c0_i32_0 = arith.constant 0 : i32
    return %arg0, %arg1, %c0_i32 : i32, i32, i32
  }
}

</mosaic_0001>

<llo_original>
// kernel: tpu_custom_call.1
$region0: #{tpu_custom_call.1}
  #allocation0 [shape = 'u32[]', space=smem, size = 0x4, offset = 0x4, fixed_abs, tag = 'smem constant byte address 0x4 - core index']
  #allocation1 [shape = 'u32[72,128]{1,0:T(1,128)}', space=vmem, size = 0x9000, scoped, tag = 'internal scratch']
  #allocation2 [shape = 'bf16[8,8]{1,0:T(8,128)(2,1)}', space=vmem, size = 0x800, scoped, tag = 'scratch operand']
  #allocation3 [shape = 'f32[8,1]{1,0:T(8,128)}', space=vmem, size = 0x1000, scoped, tag = 'scratch operand']
  #allocation4 [shape = 'f32[8,1]{1,0:T(8,128)}', space=vmem, size = 0x1000, scoped, tag = 'scratch operand']
  #allocation5 [shape = 'f32[8,8]{1,0:T(8,128)}', space=vmem, size = 0x1000, scoped, tag = 'scratch operand']
  #allocation6 [shape = 'f32[8,32]{1,0:T(8,128)}', space=vmem, size = 0x1000, scoped, tag = 'scratch operand']
  %s0 = inlined_call_operand.vmem [shape: f32[2,8,32], index: 0, kind: input, shape index: {}]
  %s1 = inlined_call_operand.vmem [shape: f32[2,16,32], index: 1, kind: input, shape index: {}]
  %s2 = inlined_call_operand.vmem [shape: bf16[4,32,8], index: 2, kind: input, shape index: {}]
  %s3 = inlined_call_operand.vmem [shape: bf16[4,32,8], index: 3, kind: input, shape index: {}]
  %s4 = inlined_call_operand.vmem [shape: bf16[4,32,8], index: 4, kind: input, shape index: {}]
  %s5 = inlined_call_operand.vmem [shape: bf16[4,8,32], index: 5, kind: input, shape index: {}]
  %s6 = inlined_call_operand.hbm [shape: f32[2,8,32], index: 6, kind: output, shape index: {}]
  %s7 = sld [smem:[#allocation0]]
  $region73: #{tpu_custom_call.1} parent=0
    _
  %s9 = ssub.s32 1, %s7
  %s10 = scalar_select 0, %s9, %s7
  $region1: #{tpu_custom_call.1} parent=0
    #allocation7 [shape = 'u8[8192]{0}', space=vmem, size = 0x2000, scoped, tag = 'output window, operand 0']
    #allocation8 [shape = 's32[2]{0}', space=sflag, size = 0x8, scoped, tag = 'scoped memory for tpu_custom_call.1']
    %11 = vsyncpa [#allocation8], 0
    %s12 = scalar_lea.sflag [#allocation8], 1
    %13 = vsyncpa %s12, 0
    loop: start=0, step=1, limit=10
    $region2: #{tpu_custom_call.1} parent=1 // loop_pre_header
      _
    $region3: #{tpu_custom_call.1} parent=1 // loop_header
      %s15 = sphi 0, %s19
      %p16 = scmp.ge.s32.totalorder %s15, 10
      %s22 = sphi 0, %s48
      %s23 = sphi 0, %s44
      %s24 = sphi 0, %s40
      %s25 = sphi 0, %s36
      %s26 = sphi 0, %s22
      %s27 = sphi 0, %s23
      %s28 = sphi 0, %s24
      %s29 = sphi 0, %s25
      %s30 = sphi 0, %s26
      %s31 = sphi 0, %s27
      %s32 = sphi 0, %s28
      %s33 = sphi 0, %s29
      %s53 = sphi 0, %s55
      %s56 = sphi 0, %s53
      %s57 = sphi 0, %s56
      %s73 = sphi 0, %s57
      %s81 = sphi 0, %s83
      %s84 = sphi 0, %s81
      %s85 = sphi 0, %s84
      %s101 = sphi 0, %s85
      %s107 = sphi 0, %s109
      %s110 = sphi 0, %s107
      %s111 = sphi 0, %s110
      %s127 = sphi 0, %s111
      %s133 = sphi 0, %s135
      %s136 = sphi 0, %s133
      %s137 = sphi 0, %s136
      %s153 = sphi 0, %s137
      %s159 = sphi 0, %s161
      %s162 = sphi 0, %s159
      %s163 = sphi 0, %s162
      %s179 = sphi 0, %s163
      %s185 = sphi 0, %s187
      %s188 = sphi 0, %s185
      %s189 = sphi 0, %s188
      %s205 = sphi 0, %s189
      %s213 = sphi 0, %s215
      %s216 = sphi 0, %s213
      %s217 = sphi 0, %s216
      %s233 = sphi 0, %s217
    $region4: #{tpu_custom_call.1} parent=1 // loop_header_branch
      %18 = sbr.rel (%p16) target = $region8
    $region5: #{tpu_custom_call.1} parent=1 // loop_body
      %s20 = ssub.s32 %s15, 1
      %s21 = ssub.s32 %s15, 2
      %s34 = sadd.s32 1, %s25
      %p35 = scmp.ge.s32.totalorder %s34, 1
      %s36 = scalar_select %p35, 0, %s34
      %s37 = sadd.s32 1, %s24
      %s38 = scalar_select %p35, %s37, %s24
      %p39 = scmp.ge.s32.totalorder %s38, 4
      %s40 = scalar_select %p39, 0, %s38
      %s41 = sadd.s32 1, %s23
      %s42 = scalar_select %p39, %s41, %s23
      %p43 = scmp.ge.s32.totalorder %s42, 1
      %s44 = scalar_select %p43, 0, %s42
      %s45 = sadd.s32 1, %s22
      %s46 = scalar_select %p43, %s45, %s22
      %p47 = scmp.ge.s32.totalorder %s46, 2
      %s48 = scalar_select %p47, 0, %s46
      %s49 = ssub.s32 %s22, %s48
      %s50 = ssub.s32 %s23, %s44
      %s51 = sor.u32 %s49, %s50
      %p52 = scmp.eq.s32.totalorder %s51, 0
      %s54 = sadd.s32 %s53, 1
      %s55 = scalar_select %p52, %s53, %s54
      %p58 = pneg %p52
      %p59 = scmp.eq.s32.totalorder %s15, 7
      %p60 = por %p58, %p59
      %p61 = scmp.ne.s32.totalorder %s53, %s56
      %p62 = scmp.eq.s32.totalorder %s15, 0
      %p63 = por %p61, %p62
      %p64 = scmp.ne.s32.totalorder %s53, %s56
      %p65 = scmp.eq.s32.totalorder %s20, 7
      %p66 = por %p64, %p65
      %p67 = scmp.ne.s32.totalorder %s56, %s57
      %p68 = scmp.eq.s32.totalorder %s20, 0
      %p69 = por %p67, %p68
      %p70 = scmp.ne.s32.totalorder %s56, %s57
      %p71 = scmp.eq.s32.totalorder %s21, 7
      %p72 = por %p70, %p71
      %p74 = scmp.ne.s32.totalorder %s57, %s73
      %p75 = scmp.eq.s32.totalorder %s21, 0
      %p76 = por %p74, %p75
      %s77 = ssub.s32 %s22, %s48
      %s78 = ssub.s32 %s25, %s36
      %s79 = sor.u32 %s77, %s78
      %p80 = scmp.eq.s32.totalorder %s79, 0
      %s82 = sadd.s32 %s81, 1
      %s83 = scalar_select %p80, %s81, %s82
      %p86 = pneg %p80
      %p87 = scmp.eq.s32.totalorder %s15, 7
      %p88 = por %p86, %p87
      %p89 = scmp.ne.s32.totalorder %s81, %s84
      %p90 = scmp.eq.s32.totalorder %s15, 0
      %p91 = por %p89, %p90
      %p92 = scmp.ne.s32.totalorder %s81, %s84
      %p93 = scmp.eq.s32.totalorder %s20, 7
      %p94 = por %p92, %p93
      %p95 = scmp.ne.s32.totalorder %s84, %s85
      %p96 = scmp.eq.s32.totalorder %s20, 0
      %p97 = por %p95, %p96
      %p98 = scmp.ne.s32.totalorder %s84, %s85
      %p99 = scmp.eq.s32.totalorder %s21, 7
      %p100 = por %p98, %p99
      %p102 = scmp.ne.s32.totalorder %s85, %s101
      %p103 = scmp.eq.s32.totalorder %s21, 0
      %p104 = por %p102, %p103
      %s105 = ssub.s32 %s24, %s40
      %p106 = scmp.eq.s32.totalorder %s105, 0
      %s108 = sadd.s32 %s107, 1
      %s109 = scalar_select %p106, %s107, %s108
      %p112 = pneg %p106
      %p113 = scmp.eq.s32.totalorder %s15, 7
      %p114 = por %p112, %p113
      %p115 = scmp.ne.s32.totalorder %s107, %s110
      %p116 = scmp.eq.s32.totalorder %s15, 0
      %p117 = por %p115, %p116
      %p118 = scmp.ne.s32.totalorder %s107, %s110
      %p119 = scmp.eq.s32.totalorder %s20, 7
      %p120 = por %p118, %p119
      %p121 = scmp.ne.s32.totalorder %s110, %s111
      %p122 = scmp.eq.s32.totalorder %s20, 0
      %p123 = por %p121, %p122
      %p124 = scmp.ne.s32.totalorder %s110, %s111
      %p125 = scmp.eq.s32.totalorder %s21, 7
      %p126 = por %p124, %p125
      %p128 = scmp.ne.s32.totalorder %s111, %s127
      %p129 = scmp.eq.s32.totalorder %s21, 0
      %p130 = por %p128, %p129
      %s131 = ssub.s32 %s24, %s40
      %p132 = scmp.eq.s32.totalorder %s131, 0
      %s134 = sadd.s32 %s133, 1
      %s135 = scalar_select %p132, %s133, %s134
      %p138 = pneg %p132
      %p139 = scmp.eq.s32.totalorder %s15, 7
      %p140 = por %p138, %p139
      %p141 = scmp.ne.s32.totalorder %s133, %s136
      %p142 = scmp.eq.s32.totalorder %s15, 0
      %p143 = por %p141, %p142
      %p144 = scmp.ne.s32.totalorder %s133, %s136
      %p145 = scmp.eq.s32.totalorder %s20, 7
      %p146 = por %p144, %p145
      %p147 = scmp.ne.s32.totalorder %s136, %s137
      %p148 = scmp.eq.s32.totalorder %s20, 0
      %p149 = por %p147, %p148
      %p150 = scmp.ne.s32.totalorder %s136, %s137
      %p151 = scmp.eq.s32.totalorder %s21, 7
      %p152 = por %p150, %p151
      %p154 = scmp.ne.s32.totalorder %s137, %s153
      %p155 = scmp.eq.s32.totalorder %s21, 0
      %p156 = por %p154, %p155
      %s157 = ssub.s32 %s24, %s40
      %p158 = scmp.eq.s32.totalorder %s157, 0
      %s160 = sadd.s32 %s159, 1
      %s161 = scalar_select %p158, %s159, %s160
      %p164 = pneg %p158
      %p165 = scmp.eq.s32.totalorder %s15, 7
      %p166 = por %p164, %p165
      %p167 = scmp.ne.s32.totalorder %s159, %s162
      %p168 = scmp.eq.s32.totalorder %s15, 0
      %p169 = por %p167, %p168
      %p170 = scmp.ne.s32.totalorder %s159, %s162
      %p171 = scmp.eq.s32.totalorder %s20, 7
      %p172 = por %p170, %p171
      %p173 = scmp.ne.s32.totalorder %s162, %s163
      %p174 = scmp.eq.s32.totalorder %s20, 0
      %p175 = por %p173, %p174
      %p176 = scmp.ne.s32.totalorder %s162, %s163
      %p177 = scmp.eq.s32.totalorder %s21, 7
      %p178 = por %p176, %p177
      %p180 = scmp.ne.s32.totalorder %s163, %s179
      %p181 = scmp.eq.s32.totalorder %s21, 0
      %p182 = por %p180, %p181
      %s183 = ssub.s32 %s24, %s40
      %p184 = scmp.eq.s32.totalorder %s183, 0
      %s186 = sadd.s32 %s185, 1
      %s187 = scalar_select %p184, %s185, %s186
      %p190 = pneg %p184
      %p191 = scmp.eq.s32.totalorder %s15, 7
      %p192 = por %p190, %p191
      %p193 = scmp.ne.s32.totalorder %s185, %s188
      %p194 = scmp.eq.s32.totalorder %s15, 0
      %p195 = por %p193, %p194
      %p196 = scmp.ne.s32.totalorder %s185, %s188
      %p197 = scmp.eq.s32.totalorder %s20, 7
      %p198 = por %p196, %p197
      %p199 = scmp.ne.s32.totalorder %s188, %s189
      %p200 = scmp.eq.s32.totalorder %s20, 0
      %p201 = por %p199, %p200
      %p202 = scmp.ne.s32.totalorder %s188, %s189
      %p203 = scmp.eq.s32.totalorder %s21, 7
      %p204 = por %p202, %p203
      %p206 = scmp.ne.s32.totalorder %s189, %s205
      %p207 = scmp.eq.s32.totalorder %s21, 0
      %p208 = por %p206, %p207
      %s209 = ssub.s32 %s22, %s48
      %s210 = ssub.s32 %s23, %s44
      %s211 = sor.u32 %s209, %s210
      %p212 = scmp.eq.s32.totalorder %s211, 0
      %s214 = sadd.s32 %s213, 1
      %s215 = scalar_select %p212, %s213, %s214
      %p218 = pneg %p212
      %p219 = scmp.eq.s32.totalorder %s15, 7
      %p220 = por %p218, %p219
      %p221 = scmp.ne.s32.totalorder %s213, %s216
      %p222 = scmp.eq.s32.totalorder %s15, 0
      %p223 = por %p221, %p222
      %p224 = scmp.ne.s32.totalorder %s213, %s216
      %p225 = scmp.eq.s32.totalorder %s20, 7
      %p226 = por %p224, %p225
      %p227 = scmp.ne.s32.totalorder %s216, %s217
      %p228 = scmp.eq.s32.totalorder %s20, 0
      %p229 = por %p227, %p228
      %p230 = scmp.ne.s32.totalorder %s216, %s217
      %p231 = scmp.eq.s32.totalorder %s21, 7
      %p232 = por %p230, %p231
      %p234 = scmp.ne.s32.totalorder %s217, %s233
      %p235 = scmp.eq.s32.totalorder %s21, 0
      %p236 = por %p234, %p235
      %p237 = scmp.le.s32.totalorder 1, %s15
      %p238 = scmp.lt.s32.totalorder %s15, 9
      %p239 = pnand %p237, %p238
      %p240 = pneg %p239
      // Predicated region
      $region9: #{tpu_custom_call.1} parent=5 // pred_check
        _
      $region10: #{tpu_custom_call.1} parent=5 // pred_check_branch
        %242 = sbr.rel (%p239) target = $region12
      $region11: #{tpu_custom_call.1} parent=5 // pred_region
        %s243 = ssub.s32 %s15, 1
      $region12: #{tpu_custom_call.1} parent=5 // pred_fallthru
        _
      %p244 = scmp.lt.s32.totalorder %s15, 8
      // Predicated region
      $region13: #{tpu_custom_call.1} parent=5 // pred_check
        %p245 = pneg %p244
      $region14: #{tpu_custom_call.1} parent=5 // pred_check_branch
        %247 = sbr.rel (%p245) target = $region16
      $region15: #{tpu_custom_call.1} parent=5 // pred_region
        // Predicated region
        $region17: #{tpu_custom_call.1} parent=15 // pred_check
          %p248 = pneg %p63
        $region18: #{tpu_custom_call.1} parent=15 // pred_check_branch
          %250 = sbr.rel (%p248) target = $region20
        $region19: #{tpu_custom_call.1} parent=15 // pred_region
          %p251 = scmp.lt.s32.totalorder %s22, 1
          %s252 = scalar_select %p251, %s22, 1
          %p253 = scmp.lt.s32.totalorder %s23, 0
          %s254 = scalar_select %p253, %s23, 0
          %s255 = sadd.s32 %s254, %s252
          %s256 = smul.addr %s255, 8
          %s257 = scalar_lea.vmem %s0, %s256
        $region20: #{tpu_custom_call.1} parent=15 // pred_fallthru
          _
        // Predicated region
        $region21: #{tpu_custom_call.1} parent=15 // pred_check
          %p258 = pneg %p91
        $region22: #{tpu_custom_call.1} parent=15 // pred_check_branch
          %260 = sbr.rel (%p258) target = $region24
        $region23: #{tpu_custom_call.1} parent=15 // pred_region
          %s261 = smul.u32 2, %s25
          %p262 = scmp.lt.s32.totalorder %s22, 1
          %s263 = scalar_select %p262, %s22, 1
          %p264 = scmp.lt.s32.totalorder %s261, 1
          %s265 = scalar_select %p264, %s261, 1
          %s266 = smul.addr %s263, 2
          %s267 = sadd.s32 %s265, %s266
          %s268 = smul.addr %s267, 8
          %s269 = scalar_lea.vmem %s1, %s268
          %s270 = smul.u32 2, %s25
        $region24: #{tpu_custom_call.1} parent=15 // pred_fallthru
          _
        // Predicated region
        $region25: #{tpu_custom_call.1} parent=15 // pred_check
          %p271 = pneg %p117
        $region26: #{tpu_custom_call.1} parent=15 // pred_check_branch
          %273 = sbr.rel (%p271) target = $region28
        $region27: #{tpu_custom_call.1} parent=15 // pred_region
          %p274 = scmp.lt.s32.totalorder %s24, 3
          %s275 = scalar_select %p274, %s24, 3
          %s276 = smul.addr %s275, 4
          %s277 = smul.addr %s276, 4
          %s278 = scalar_lea.vmem %s2, %s277
        $region28: #{tpu_custom_call.1} parent=15 // pred_fallthru
          _
        // Predicated region
        $region29: #{tpu_custom_call.1} parent=15 // pred_check
          %p279 = pneg %p143
        $region30: #{tpu_custom_call.1} parent=15 // pred_check_branch
          %281 = sbr.rel (%p279) target = $region32
        $region31: #{tpu_custom_call.1} parent=15 // pred_region
          %p282 = scmp.lt.s32.totalorder %s24, 3
          %s283 = scalar_select %p282, %s24, 3
          %s284 = smul.addr %s283, 4
          %s285 = smul.addr %s284, 4
          %s286 = scalar_lea.vmem %s3, %s285
        $region32: #{tpu_custom_call.1} parent=15 // pred_fallthru
          _
        // Predicated region
        $region33: #{tpu_custom_call.1} parent=15 // pred_check
          %p287 = pneg %p169
        $region34: #{tpu_custom_call.1} parent=15 // pred_check_branch
          %289 = sbr.rel (%p287) target = $region36
        $region35: #{tpu_custom_call.1} parent=15 // pred_region
          %p290 = scmp.lt.s32.totalorder %s24, 3
          %s291 = scalar_select %p290, %s24, 3
          %s292 = smul.addr %s291, 4
          %s293 = smul.addr %s292, 4
          %s294 = scalar_lea.vmem %s4, %s293
        $region36: #{tpu_custom_call.1} parent=15 // pred_fallthru
          _
        // Predicated region
        $region37: #{tpu_custom_call.1} parent=15 // pred_check
          %p295 = pneg %p195
        $region38: #{tpu_custom_call.1} parent=15 // pred_check_branch
          %297 = sbr.rel (%p295) target = $region40
        $region39: #{tpu_custom_call.1} parent=15 // pred_region
          %p298 = scmp.lt.s32.totalorder %s24, 3
          %s299 = scalar_select %p298, %s24, 3
          %s300 = smul.addr %s299, 4
          %s301 = scalar_lea.vmem %s5, %s300
        $region40: #{tpu_custom_call.1} parent=15 // pred_fallthru
          _
      $region16: #{tpu_custom_call.1} parent=5 // pred_fallthru
        _
      %p302 = scmp.le.s32.totalorder 1, %s15
      %p303 = scmp.lt.s32.totalorder %s15, 9
      %p304 = pnand %p302, %p303
      %p305 = pneg %p304
      // Predicated region
      $region41: #{tpu_custom_call.1} parent=5 // pred_check
        _
      $region42: #{tpu_custom_call.1} parent=5 // pred_check_branch
        %307 = sbr.rel (%p304) target = $region44
      $region43: #{tpu_custom_call.1} parent=5 // pred_region
        %s308 = ssub.s32 %s15, 1
        %p309 = scmp.lt.s32.totalorder %s26, 1
        %s310 = scalar_select %p309, %s26, 1
        %p311 = scmp.lt.s32.totalorder %s27, 0
        %s312 = scalar_select %p311, %s27, 0
        %s313 = sadd.s32 %s312, %s310
        %s314 = smul.addr %s313, 8
        %s315 = scalar_lea.vmem %s0, %s314
        %p316 = pneg %p69
        %p317 = pneg %p66
        %s318 = smul.u32 2, %s29
        %p319 = scmp.lt.s32.totalorder %s26, 1
        %s320 = scalar_select %p319, %s26, 1
        %p321 = scmp.lt.s32.totalorder %s318, 1
        %s322 = scalar_select %p321, %s318, 1
        %s323 = smul.addr %s320, 2
        %s324 = sadd.s32 %s322, %s323
        %s325 = smul.addr %s324, 8
        %s326 = scalar_lea.vmem %s1, %s325
        %p327 = pneg %p97
        %p328 = pneg %p94
        %p329 = scmp.lt.s32.totalorder %s28, 3
        %s330 = scalar_select %p329, %s28, 3
        %s331 = smul.addr %s330, 4
        %s332 = smul.addr %s331, 4
        %s333 = scalar_lea.vmem %s2, %s332
        %p334 = pneg %p123
        %p335 = pneg %p120
        %p336 = scmp.lt.s32.totalorder %s28, 3
        %s337 = scalar_select %p336, %s28, 3
        %s338 = smul.addr %s337, 4
        %s339 = smul.addr %s338, 4
        %s340 = scalar_lea.vmem %s3, %s339
        %p341 = pneg %p149
        %p342 = pneg %p146
        %p343 = scmp.lt.s32.totalorder %s28, 3
        %s344 = scalar_select %p343, %s28, 3
        %s345 = smul.addr %s344, 4
        %s346 = smul.addr %s345, 4
        %s347 = scalar_lea.vmem %s4, %s346
        %p348 = pneg %p175
        %p349 = pneg %p172
        %p350 = scmp.lt.s32.totalorder %s28, 3
        %s351 = scalar_select %p350, %s28, 3
        %s352 = smul.addr %s351, 4
        %s353 = scalar_lea.vmem %s5, %s352
        %p354 = pneg %p201
        %p355 = pneg %p198
        %p356 = pneg %p229
        %p357 = pneg %p226
        %s358 = sand.u32 %s216, 1
        %s359 = scalar_lea.sflag [#allocation8], %s358
        %s360 = sand.u32 %s216, 1
        %s361 = smul.addr %s360, 8
        %s362 = scalar_lea.vmem [#allocation7], %s361
        %p363 = scmp.lt.s32.totalorder %s26, 1
        %s364 = scalar_select %p363, %s26, 1
        %p365 = scmp.lt.s32.totalorder %s27, 0
        %s366 = scalar_select %p365, %s27, 0
        %s367 = sadd.s32 %s366, %s364
        %s368 = smul.addr %s367, 8
        %s369 = scalar_lea.vmem %s0, %s368
        %s370 = smul.u32 2, %s29
        %p371 = scmp.lt.s32.totalorder %s26, 1
        %s372 = scalar_select %p371, %s26, 1
        %p373 = scmp.lt.s32.totalorder %s370, 1
        %s374 = scalar_select %p373, %s370, 1
        %s375 = smul.addr %s372, 2
        %s376 = sadd.s32 %s374, %s375
        %s377 = smul.addr %s376, 8
        %s378 = scalar_lea.vmem %s1, %s377
        %s379 = smul.u32 2, %s29
        %p380 = scmp.lt.s32.totalorder %s28, 3
        %s381 = scalar_select %p380, %s28, 3
        %s382 = smul.addr %s381, 4
        %s383 = smul.addr %s382, 4
        %s384 = scalar_lea.vmem %s2, %s383
        %p385 = scmp.lt.s32.totalorder %s28, 3
        %s386 = scalar_select %p385, %s28, 3
        %s387 = smul.addr %s386, 4
        %s388 = smul.addr %s387, 4
        %s389 = scalar_lea.vmem %s3, %s388
        %p390 = scmp.lt.s32.totalorder %s28, 3
        %s391 = scalar_select %p390, %s28, 3
        %s392 = smul.addr %s391, 4
        %s393 = smul.addr %s392, 4
        %s394 = scalar_lea.vmem %s4, %s393
        %p395 = scmp.lt.s32.totalorder %s28, 3
        %s396 = scalar_select %p395, %s28, 3
        %s397 = smul.addr %s396, 4
        %s398 = scalar_lea.vmem %s5, %s397
        %p400 = scmp.eq.s32.totalorder %s28, 0
        %p401 = scmp.eq.s32.totalorder %s29, 0
        %p402 = pnand %p400, %p401
        %p403 = pneg %p402
        // Predicated region
        $region45: #{tpu_custom_call.1} parent=43 // pred_check
          _
        $region46: #{tpu_custom_call.1} parent=43 // pred_check_branch
          %405 = sbr.rel (%p402) target = $region48
        $region47: #{tpu_custom_call.1} parent=43 // pred_region
          %vm406 = vcmask 261120
          %407 = vst.msk [vmem:[#allocation6] sm:$0xff] %vm406, 0.0
        $region48: #{tpu_custom_call.1} parent=43 // pred_fallthru
          _
        // Predicated region
        $region49: #{tpu_custom_call.1} parent=43 // pred_check
          %p408 = pneg %p401
        $region50: #{tpu_custom_call.1} parent=43 // pred_check_branch
          %410 = sbr.rel (%p408) target = $region52
        $region51: #{tpu_custom_call.1} parent=43 // pred_region
          %v411 = vld [vmem:[%s369] sm:$0xff]
          %v412 = vpack.c.bf16 %v411, %v411
          %v413 = vld [vmem:[%s384] sm:$0xf]
          %v414 = vld [vmem:[%s384 + $0x4] sm:$0xf]
          %v415 = vld [vmem:[%s384 + $0x8] sm:$0xf]
          %v416 = vld [vmem:[%s384 + $0xc] sm:$0xf]
          %v421 = vunpack.c.l.b16 %v413
          %v422 = vunpack.c.l.b16 %v414
          %v423 = vunpack.c.l.b16 %v415
          %v424 = vunpack.c.l.b16 %v416
          %v425 = vpack.c.b16 %v422, %v421
          %v426 = vpack.c.b16 %v424, %v423
          %vm429 = vcmask 261120
          %v431 = vsel %vm429, %v412, 0
          %433 = vmatpush.bf16.msra.mxu0 0
          %434 = vmatpush.bf16.msra.mxu0 0
          %435 = vmatpush.bf16.msra.mxu0 0
          %436 = vmatpush.bf16.msra.mxu0 0
          %437 = vmatpush.bf16.msra.mxu0 0
          %438 = vmatpush.bf16.msra.mxu0 0
          %439 = vmatpush.bf16.msra.mxu0 %v426
          %440 = vmatpush.bf16.msra.mxu0 %v425
          %441 = vmatmul.bf16.gmra.mxu0 %v431
          %v442 = vpop.f32.mrf.mxu0
          %v443 = vadd.f32 0.0, %v442
          %v444 = vpop.f32.mrf.mxu0
          %445 = vdwg.mxu0
          %v446 = vmul.f32 %v443, %v443
          %vm447 = vcmask 64512
          %v448 = vsel %vm447, %v446, 0.0
          %449 = vadd.xlane.f32.xlu0 %v448
          %v450 = vpop.xlane.xlu0 %449
          %v451 = vmax.f32 %v450, 1e-24
          %v452 = vrsqrt.pop %v451
          %v453 = vmul.f32 %v452, %v451
          %v454 = vmul.f32 %v453, %v452
          %v455 = vmul.f32 0.5, %v454
          %v456 = vsub.f32 1.5, %v455
          %v457 = vmul.f32 %v452, %v456
          %vm458 = vweird.f32 %v451
          %vm459 = vweird.f32 %v452
          %vm460 = vmor %vm458, %vm459
          %v461 = vsel %vm460, %v452, %v457
          %v462 = vmul.f32 %v443, %v461
          %v463 = vmul.f32 %v462, 0.35355338
          %v464 = vpack.c.bf16 %v463, %v463
          %vm465 = vcmask 60416
          %466 = vst.msk [vmem:[#allocation2] sm:$0xf] %vm465, %v464
          %vm467 = vcmask 7168
          %468 = vst.msk [vmem:[#allocation3] sm:$0xff] %vm467, -inf
          %469 = vst.msk [vmem:[#allocation4] sm:$0xff] %vm467, 0.0
          %470 = vst.msk [vmem:[#allocation5] sm:$0xff] %vm447, 0.0
        $region52: #{tpu_custom_call.1} parent=43 // pred_fallthru
          _
        %v471 = vld [vmem:[%s378] sm:$0xff]
        %v472 = vld [vmem:[%s378 + $0x8] sm:$0xff]
        %v473 = vpack.c.bf16 %v472, %v471
        %v474 = vld [vmem:[%s389] sm:$0xf]
        %v475 = vld [vmem:[%s389 + $0x4] sm:$0xf]
        %v476 = vld [vmem:[%s389 + $0x8] sm:$0xf]
        %v477 = vld [vmem:[%s389 + $0xc] sm:$0xf]
        %v482 = vunpack.c.l.b16 %v474
        %v483 = vunpack.c.l.b16 %v475
        %v484 = vunpack.c.l.b16 %v476
        %v485 = vunpack.c.l.b16 %v477
        %v486 = vpack.c.b16 %v483, %v482
        %v487 = vpack.c.b16 %v485, %v484
        %vm490 = vcmask 261120
        %v492 = vsel %vm490, %v473, 0
        %494 = vmatpush.bf16.msra.mxu0 0
        %495 = vmatpush.bf16.msra.mxu0 0
        %496 = vmatpush.bf16.msra.mxu0 0
        %497 = vmatpush.bf16.msra.mxu0 0
        %498 = vmatpush.bf16.msra.mxu0 0
        %499 = vmatpush.bf16.msra.mxu0 0
        %500 = vmatpush.bf16.msra.mxu0 %v487
        %501 = vmatpush.bf16.msra.mxu0 %v486
        %502 = vmatmul.bf16.gmra.mxu0 %v492
        %v503 = vpop.f32.mrf.mxu0
        %v504 = vadd.f32 0.0, %v503
        %v505 = vpop.f32.mrf.mxu0
        %v506 = vadd.f32 0.0, %v505
        %507 = vdwg.mxu0
        %v508 = vld [vmem:[%s394] sm:$0xf]
        %v509 = vld [vmem:[%s394 + $0x4] sm:$0xf]
        %v510 = vld [vmem:[%s394 + $0x8] sm:$0xf]
        %v511 = vld [vmem:[%s394 + $0xc] sm:$0xf]
        %v516 = vunpack.c.l.b16 %v508
        %v517 = vunpack.c.l.b16 %v509
        %v518 = vunpack.c.l.b16 %v510
        %v519 = vunpack.c.l.b16 %v511
        %v520 = vpack.c.b16 %v517, %v516
        %v521 = vpack.c.b16 %v519, %v518
        %524 = vmatpush.bf16.msra.mxu0 0
        %525 = vmatpush.bf16.msra.mxu0 0
        %526 = vmatpush.bf16.msra.mxu0 0
        %527 = vmatpush.bf16.msra.mxu0 0
        %528 = vmatpush.bf16.msra.mxu0 0
        %529 = vmatpush.bf16.msra.mxu0 0
        %530 = vmatpush.bf16.msra.mxu0 %v521
        %531 = vmatpush.bf16.msra.mxu0 %v520
        %532 = vmatmul.bf16.gmra.mxu0 %v492
        %v533 = vpop.f32.mrf.mxu0
        %v534 = vadd.f32 0.0, %v533
        %v535 = vpop.f32.mrf.mxu0
        %v536 = vadd.f32 0.0, %v535
        %537 = vdwg.mxu0
        %v538 = vmul.f32 %v504, %v504
        %v539 = vmul.f32 %v506, %v506
        %vm540 = vcmask 64512
        %v541 = vsel %vm540, %v538, 0.0
        %542 = vadd.xlane.f32.xlu0 %v541
        %v543 = vpop.xlane.xlu0 %542
        %v544 = vsel %vm540, %v539, 0.0
        %545 = vadd.xlane.f32.xlu0 %v544
        %v546 = vpop.xlane.xlu0 %545
        %v547 = vmax.f32 %v543, 1e-24
        %v548 = vmax.f32 %v546, 1e-24
        %v549 = vrsqrt.pop %v547
        %v550 = vmul.f32 %v549, %v547
        %v551 = vmul.f32 %v550, %v549
        %v552 = vmul.f32 0.5, %v551
        %v553 = vsub.f32 1.5, %v552
        %v554 = vmul.f32 %v549, %v553
        %vm555 = vweird.f32 %v547
        %vm556 = vweird.f32 %v549
        %vm557 = vmor %vm555, %vm556
        %v558 = vsel %vm557, %v549, %v554
        %v559 = vrsqrt.pop %v548
        %v560 = vmul.f32 %v559, %v548
        %v561 = vmul.f32 %v560, %v559
        %v562 = vmul.f32 0.5, %v561
        %v563 = vsub.f32 1.5, %v562
        %v564 = vmul.f32 %v559, %v563
        %vm565 = vweird.f32 %v548
        %vm566 = vweird.f32 %v559
        %vm567 = vmor %vm565, %vm566
        %v568 = vsel %vm567, %v559, %v564
        %v569 = vmul.f32 %v504, %v558
        %v570 = vmul.f32 %v506, %v568
        %v571 = vld [vmem:[#allocation2] sm:$0xf]
        %v572 = vpack.c.bf16 %v570, %v569
        %v574 = vsel %vm540, %v571, 0
        %v577 = vsel %vm540, %v572, 0
        %579 = vmatpush.bf16.xpose.msra.mxu0 0
        %580 = vmatpush.bf16.xpose.msra.mxu0 0
        %581 = vmatpush.bf16.xpose.msra.mxu0 0
        %582 = vmatpush.bf16.xpose.msra.mxu0 0
        %583 = vmatpush.bf16.xpose.msra.mxu0 0
        %584 = vmatpush.bf16.xpose.msra.mxu0 0
        %585 = vmatpush.bf16.xpose.msra.mxu0 0
        %586 = vmatpush.bf16.xpose.msra.mxu0 %v577
        %587 = vmatmul.bf16.gmra.mxu0 %v574
        %v588 = vpop.f32.mrf.mxu0
        %v589 = vadd.f32 0.0, %v588
        %v590 = vpop.f32.mrf.mxu0
        %591 = vdwg.mxu0
        %v592 = vld [vmem:[#allocation3] sm:$0xff]
        %vm593 = vcmask 130048
        %v594 = vsel %vm593, %v589, -inf
        %595 = vmax.xlane.f32.xlu0 %v594
        %v596 = vpop.xlane.xlu0 %595
        %v597 = vmax.f32 %v592, %v596
        %v598 = vsub.f32 %v592, %v597
        %v599 = vmul.f32 %v598, 1.442695
        %v600 = vpow.pop %v599
        %602 = vset.pattern.permute.xlu0 0
        %603 = vperm.xlu0 %602, %v597
        %v604 = vpop.permute.xlu0 %603
        %v606 = vsub.f32 %v589, %v604
        %v607 = vmul.f32 %v606, 1.442695
        %v608 = vpow.pop %v607
        %v609 = vld [vmem:[#allocation4] sm:$0xff]
        %v610 = vmul.f32 %v600, %v609
        %v611 = vsel %vm593, %v608, 0.0
        %612 = vadd.xlane.f32.xlu0 %v611
        %v613 = vpop.xlane.xlu0 %612
        %v614 = vadd.f32 %v610, %v613
        %vm615 = vcmask 7168
        %616 = vst.msk [vmem:[#allocation4] sm:$0xff] %vm615, %v614
        %v617 = vld [vmem:[#allocation5] sm:$0xff]
        %619 = vset.pattern.permute.xlu0 0
        %620 = vperm.xlu0 %619, %v600
        %v621 = vpop.permute.xlu0 %620
        %v623 = vmul.f32 %v621, %v617
        %v624 = vpack.c.bf16 %v608, %v608
        %v625 = vpack.c.bf16 %v536, %v534
        %v627 = vsel %vm593, %v624, 0
        %629 = vmatpush.bf16.msra.mxu0 0
        %630 = vmatpush.bf16.msra.mxu0 0
        %631 = vmatpush.bf16.msra.mxu0 0
        %632 = vmatpush.bf16.msra.mxu0 0
        %633 = vmatpush.bf16.msra.mxu0 0
        %634 = vmatpush.bf16.msra.mxu0 0
        %635 = vmatpush.bf16.msra.mxu0 0
        %636 = vmatpush.bf16.msra.mxu0 %v625
        %637 = vmatmul.bf16.gmra.mxu0 %v627
        %v638 = vpop.f32.mrf.mxu0
        %v639 = vadd.f32 0.0, %v638
        %v640 = vpop.f32.mrf.mxu0
        %641 = vdwg.mxu0
        %v642 = vadd.f32 %v623, %v639
        %643 = vst.msk [vmem:[#allocation5] sm:$0xff] %vm540, %v642
        %644 = vst.msk [vmem:[#allocation3] sm:$0xff] %vm615, %v597
        // Predicated region
        $region53: #{tpu_custom_call.1} parent=43 // pred_check
          %p645 = pneg %p401
        $region54: #{tpu_custom_call.1} parent=43 // pred_check_branch
          %647 = sbr.rel (%p645) target = $region56
        $region55: #{tpu_custom_call.1} parent=43 // pred_region
          %v648 = vld [vmem:[#allocation5] sm:$0xff]
          %v649 = vld [vmem:[#allocation4] sm:$0xff]
          %v650 = vrcp.pop %v649
          %652 = vset.pattern.permute.xlu0 0
          %653 = vperm.xlu0 %652, %v650
          %v654 = vpop.permute.xlu0 %653
          %v656 = vmul.f32 %v648, %v654
          %v657 = vld [vmem:[#allocation6] sm:$0xff]
          %v658 = vpack.c.bf16 %v656, %v656
          %v659 = vld [vmem:[%s398] sm:$0xf]
          %v661 = vsel %vm540, %v658, 0
          %vm663 = vcmask 1043456
          %v665 = vsel %vm663, %v659, 0
          %667 = vmatpush.bf16.msra.mxu0 0
          %668 = vmatpush.bf16.msra.mxu0 0
          %669 = vmatpush.bf16.msra.mxu0 0
          %670 = vmatpush.bf16.msra.mxu0 0
          %671 = vmatpush.bf16.msra.mxu0 0
          %672 = vmatpush.bf16.msra.mxu0 0
          %673 = vmatpush.bf16.msra.mxu0 0
          %674 = vmatpush.bf16.msra.mxu0 %v665
          %675 = vmatmul.bf16.gmra.mxu0 %v661
          %v676 = vpop.f32.mrf.mxu0
          %v677 = vadd.f32 0.0, %v676
          %v678 = vpop.f32.mrf.mxu0
          %679 = vdwg.mxu0
          %v680 = vadd.f32 %v657, %v677
          %681 = vst.msk [vmem:[#allocation6] sm:$0xff] %vm490, %v680
        $region56: #{tpu_custom_call.1} parent=43 // pred_fallthru
          _
        %p682 = scmp.eq.s32.totalorder %s28, 3
        %p683 = pnand %p401, %p682
        %p684 = pneg %p683
        // Predicated region
        $region57: #{tpu_custom_call.1} parent=43 // pred_check
          _
        $region58: #{tpu_custom_call.1} parent=43 // pred_check_branch
          %686 = sbr.rel (%p683) target = $region60
        $region59: #{tpu_custom_call.1} parent=43 // pred_region
          %v687 = vld [vmem:[#allocation6] sm:$0xff]
          %688 = vst.msk [vmem:[%s362] sm:$0xff] %vm490, %v687
        $region60: #{tpu_custom_call.1} parent=43 // pred_fallthru
          _
        %s689 = sand.u32 %s216, 1
        %s690 = scalar_lea.sflag [#allocation8], %s689
        %s691 = sand.u32 %s216, 1
        %s692 = smul.addr %s691, 8
        %s693 = scalar_lea.vmem [#allocation7], %s692
        // Predicated region
        $region61: #{tpu_custom_call.1} parent=43 // pred_check
          %p694 = pneg %p226
        $region62: #{tpu_custom_call.1} parent=43 // pred_check_branch
          %696 = sbr.rel (%p694) target = $region64
        $region63: #{tpu_custom_call.1} parent=43 // pred_region
          %698 = vsyncadd %s690, 0
          %s699 = sadd.s32 %s27, %s26
          %s700 = smul.addr %s699, 8
          %s701 = scalar_lea.hbm %s6, %s700
          %s703 = sshll.u32 %s693, 4
          %s704 = int_to_ptr.vmem [resolvable:$true] %s703
          %s705 = sshll.u32 %s701, 4
          %s706 = int_to_ptr.hbm [resolvable:$true] %s705
          %708 = dma.vmem_to_hbm [thread:$0]  %s704, 128, %s706, %s690
        $region64: #{tpu_custom_call.1} parent=43 // pred_fallthru
          _
      $region44: #{tpu_custom_call.1} parent=5 // pred_fallthru
        _
      %p709 = scmp.le.s32.totalorder 2, %s15
      // Predicated region
      $region65: #{tpu_custom_call.1} parent=5 // pred_check
        %p710 = pneg %p709
      $region66: #{tpu_custom_call.1} parent=5 // pred_check_branch
        %712 = sbr.rel (%p710) target = $region68
      $region67: #{tpu_custom_call.1} parent=5 // pred_region
        %s713 = ssub.s32 %s15, 2
        // Predicated region
        $region69: #{tpu_custom_call.1} parent=67 // pred_check
          %p714 = pneg %p232
        $region70: #{tpu_custom_call.1} parent=67 // pred_check_branch
          %716 = sbr.rel (%p714) target = $region72
        $region71: #{tpu_custom_call.1} parent=67 // pred_region
          %s717 = sand.u32 %s217, 1
          %s718 = scalar_lea.sflag [#allocation8], %s717
          %s719 = sand.u32 %s217, 1
          %s720 = smul.addr %s719, 8
          %s721 = scalar_lea.vmem [#allocation7], %s720
          %723 = dma.done %s718, 128
        $region72: #{tpu_custom_call.1} parent=67 // pred_fallthru
          _
      $region68: #{tpu_custom_call.1} parent=5 // pred_fallthru
        _
    $region6: #{tpu_custom_call.1} parent=1 // loop_footer
      %s19 = sadd.s32 1, %s15
    $region7: #{tpu_custom_call.1} parent=1 // loop_footer_branch
      %14 = sbr.rel target = $region3
    $region8: #{tpu_custom_call.1} parent=1 // loop_exit
      _
    %724 = vsyncpa [#allocation8], 1
    %s725 = scalar_lea.sflag [#allocation8], 1
    %726 = vsyncpa %s725, 1

</llo_original>
